<compile_context>
chip_gen: v7x
topology: tpu7x:2x2x1
jax: 0.10.0
libtpu: 0.0.40
codegen_flags: <defaults>
</compile_context>

<pallas_src>
import jax
import jax.numpy as jnp
from jax import lax
from jax.experimental import pallas as pl
from jax.experimental.pallas import tpu as pltpu


def _round_up(n, m):
    return -(-n // m) * m


def _vmem_budget():
    """Per-generation VMEM plan: (per-x-buffer budget, base vmem_limit, phys cap)."""
    cap = 64 << 20                      # conservative default == v7x per-TC VMEM
    try:
        info = pltpu.get_tpu_info()
        cap = int(getattr(info, "vmem_capacity_bytes", cap)) or cap
    except Exception:
        pass
    if cap >= (96 << 20):               # v5e / v6e: 128 MiB physical VMEM
        return 24 << 20, 96 << 20, cap
    return 18 << 20, 48 << 20, cap      # v7x (64 MiB per TC) or unknown


def _choose_tiles(B, F, itemsize, per_buffer):
    """Pick (batch_tile, feature_tile) using lane/sublane-padded byte counts."""
    F_pad = _round_up(max(F, 1), 128)

    # --- feature (K) tiling: only when even a 128-row full-F tile busts the budget
    if F <= 128 or 128 * F_pad * itemsize <= per_buffer:
        tk = F                                      # whole feature dim, one K block
    else:
        max_tk = max(128, (per_buffer // (itemsize * 256)) // 128 * 128)
        tk = 0
        cand = min(max_tk, F_pad)
        while cand >= 128:                          # multiple of 128 that divides F
            if F % cand == 0:                       # -> no out-of-bounds garbage in
                tk = cand                           #    the reduction
                break
            cand -= 128
        if tk == 0:
            # TODO(synk): very wide F that is not a multiple of 128 needs a masked
            # last-K tile; fall back to a single full-F block for correctness.
            tk = F
    tk_pad = _round_up(tk, 128)

    # --- batch tiling
    rows = per_buffer // (tk_pad * itemsize)
    if rows >= B:
        tb = B                                      # single block == full array dim
    else:
        tb = max(128, (rows // 128) * 128)          # multiple of 128: lane-dense out
        steps = -(-B // tb)
        # prefer an even number of batch tiles so v7x's two TensorCores stay busy
        if steps > 1 and steps % 2 == 1:
            tb_even = _round_up(-(-B // (steps + 1)), 128)
            if 128 <= tb_even <= tb and (-(-B // tb_even)) % 2 == 0:
                tb = tb_even
    return tb, tk


def _linear_kernel(x_ref, w_ref, b_ref, o_ref, acc_ref):
    # x_ref: (TB, TK)   w_ref: (1, TK)   b_ref: (1,) in SMEM
    # o_ref: (1, TB) lane-dense          acc_ref: (1, TB) f32 scratch
    k = pl.program_id(1)

    @pl.when(k == 0)
    def _():
        acc_ref[...] = jnp.zeros_like(acc_ref)

    # Contract the feature dim of both operands: (1, TK) . (TB, TK)^T -> (1, TB).
    # Same contraction pattern as flash-attention q.k^T; the (TB, TK) tile goes to
    # the MXU as (transposed) weights, no VMEM materialisation of x^T, and the
    # result comes out lane-dense (last dim = TB).
    acc_ref[...] += lax.dot_general(
        w_ref[...], x_ref[...],
        dimension_numbers=(((1,), (1,)), ((), ())),
        preferred_element_type=jnp.float32,
    )

    @pl.when(k == pl.num_programs(1) - 1)
    def _():
        o_ref[...] = (acc_ref[...] + b_ref[0]).astype(o_ref.dtype)


def linear_forward(x, weight, bias, *, tile_rows=None, tile_cols=None):
    """LinearNet forward.

    x: (B, F) in its native dtype (f32 or bf16 -- streamed as-is, no wrapper cast),
    weight: (1, F) (native PyTorch nn.Linear layout), bias: (1,).
    Returns (B, 1) in x's dtype.
    """
    B, F = x.shape
    x = jnp.asarray(x)
    w = jnp.asarray(weight).reshape(1, F).astype(x.dtype)   # lane-dense, matches x
    b = jnp.asarray(bias).reshape(1).astype(jnp.float32)    # scalar -> SMEM

    itemsize = jnp.dtype(x.dtype).itemsize
    per_buffer, base_limit, cap = _vmem_budget()
    tb, tk = _choose_tiles(B, F, itemsize, per_buffer)
    if tile_rows is not None:
        tb = int(tile_rows)
    if tile_cols is not None:
        tk = int(tile_cols)

    # Lane/sublane-padded VMEM footprint: double-buffered x/w/out + accumulator.
    x_tile = _round_up(tb, 16) * _round_up(tk, 128) * itemsize
    w_tile = 8 * _round_up(tk, 128) * itemsize
    o_tile = 8 * _round_up(tb, 128) * itemsize
    acc_b = 8 * _round_up(tb, 128) * 4
    needed = 2 * (x_tile + w_tile + o_tile) + acc_b + (4 << 20)
    vmem_limit = int(min(cap, max(base_limit, needed)))

    grid = (pl.cdiv(B, tb), pl.cdiv(F, tk))

    y_row = pl.pallas_call(
        _linear_kernel,
        out_shape=jax.ShapeDtypeStruct((1, B), x.dtype),
        grid_spec=pltpu.PrefetchScalarGridSpec(
            num_scalar_prefetch=0,
            grid=grid,
            in_specs=[
                pl.BlockSpec((tb, tk), lambda i, k: (i, k)),        # x: (batch, K) tiled
                pl.BlockSpec((1, tk), lambda i, k: (0, k)),         # weight: K tiled
                pl.BlockSpec(memory_space=pltpu.MemorySpace.SMEM),  # bias scalar
            ],
            out_specs=pl.BlockSpec((1, tb), lambda i, k: (0, i)),   # lane-dense row
            scratch_shapes=[pltpu.VMEM((1, tb), jnp.float32)],      # f32 accumulator
        ),
        compiler_params=pltpu.CompilerParams(
            # batch tiles independent -> megacore-shard on v7x; reduction axis last.
            # TODO(synk): on v7x confirm via xprof that the batch axis really splits
            # across both TensorCores; if not, switch it to pltpu.CORE_PARALLEL.
            dimension_semantics=("parallel", "arbitrary"),
            vmem_limit_bytes=vmem_limit,
        ),
    )(x, w, b)
    return y_row.reshape(B, 1)


if __name__ == "__main__":
    key = jax.random.PRNGKey(0)
    kx, kw, kb, kx2, kw2, kx3, kw3 = jax.random.split(key, 7)

    # 1) Classic linear-regression shape: 2 input features, small batch.
    batch, in_features = 8, 2
    x = jax.random.normal(kx, (batch, in_features), dtype=jnp.float32)
    bound = 1.0 / (in_features ** 0.5)
    weight = jax.random.uniform(kw, (1, in_features), jnp.float32, -bound, bound)
    bias = jax.random.uniform(kb, (1,), jnp.float32, -bound, bound)

    y = jax.block_until_ready(linear_forward(x, weight, bias))
    y_ref = x @ weight.T + bias
    assert y.shape == (batch, 1)
    assert jnp.allclose(y, y_ref, atol=1e-5), "mismatch vs reference (small)"

    # 2) Multi-batch-tile pipelined path (grid[0] > 1, lane-dense 128-wide blocks).
    b2, f2 = 384, 32
    x2 = jax.random.normal(kx2, (b2, f2), dtype=jnp.float32)
    w2 = jax.random.normal(kw2, (1, f2), dtype=jnp.float32) * 0.1
    y2 = jax.block_until_ready(linear_forward(x2, w2, bias, tile_rows=128))
    y2_ref = x2 @ w2.T + bias
    assert y2.shape == (b2, 1)
    assert jnp.allclose(y2, y2_ref, atol=1e-4), "mismatch vs reference (tiled)"

    # 3) bf16 inputs streamed without a wrapper f32 cast (f32 MXU accumulation).
    b3, f3 = 256, 64
    x3 = jax.random.normal(kx3, (b3, f3), dtype=jnp.float32).astype(jnp.bfloat16)
    w3 = (jax.random.normal(kw3, (1, f3), dtype=jnp.float32) * 0.1).astype(jnp.bfloat16)
    y3 = jax.block_until_ready(linear_forward(x3, w3, bias))
    y3_ref = x3.astype(jnp.float32) @ w3.astype(jnp.float32).T + bias
    assert y3.shape == (b3, 1)
    assert jnp.allclose(y3.astype(jnp.float32), y3_ref, rtol=2e-2, atol=2e-2), \
        "mismatch vs reference (bf16)"

    print("KERNEL_OK")
</pallas_src>

<mosaic_0001>
module attributes {stable_mosaic.version = 11 : i64} {
  func.func @_linear_kernel(%arg0: i32, %arg1: i32, %arg2: memref<8x2xf32, #tpu.memory_space<vmem>>, %arg3: memref<1x2xf32, #tpu.memory_space<vmem>>, %arg4: memref<1xf32, #tpu.memory_space<smem>>, %arg5: memref<1x8xf32, #tpu.memory_space<vmem>>, %arg6: memref<1x8xf32, #tpu.memory_space<vmem>>) attributes {dimension_semantics = [#tpu.dimension_semantics<parallel>, #tpu.dimension_semantics<arbitrary>], iteration_bounds = array<i64: 1, 1>, scalar_prefetch = 0 : i64, scratch_operands = 1 : i64, tpu.core_type = #tpu.core_type<tc>, window_params = [{transform_indices = @transform_0, window_bounds = array<i64: 8, 2>}, {transform_indices = @transform_1, window_bounds = array<i64: 1, 2>}, {transform_indices = @transform_2, window_bounds = array<i64: 1>}, {transform_indices = @transform_3, window_bounds = array<i64: 1, 8>}]} {
    %c0_i32 = arith.constant 0 : i32
    %0 = arith.cmpi eq, %arg1, %c0_i32 : i32
    %1 = arith.extui %0 : i1 to i32
    %c0_i32_0 = arith.constant 0 : i32
    %2 = arith.cmpi ne, %1, %c0_i32_0 : i32
    scf.if %2 {
      %cst_10 = arith.constant 0.000000e+00 : f32
      %12 = vector.broadcast %cst_10 : f32 to vector<1x8xf32>
      %c0_11 = arith.constant 0 : index
      %c0_12 = arith.constant 0 : index
      %13 = vector.load %arg6[%c0_11, %c0_12] : memref<1x8xf32, #tpu.memory_space<vmem>>, vector<1x8xf32>
      tpu.vector_store %arg6[%c0_11, %c0_12], %12 {strides = array<i32>} : memref<1x8xf32, #tpu.memory_space<vmem>>, vector<1x8xf32>,
    } else {
    }
    %c0 = arith.constant 0 : index
    %c0_1 = arith.constant 0 : index
    %3 = vector.load %arg6[%c0, %c0_1] : memref<1x8xf32, #tpu.memory_space<vmem>>, vector<1x8xf32>
    %c0_2 = arith.constant 0 : index
    %c0_3 = arith.constant 0 : index
    %4 = vector.load %arg3[%c0_2, %c0_3] : memref<1x2xf32, #tpu.memory_space<vmem>>, vector<1x2xf32>
    %c0_4 = arith.constant 0 : index
    %c0_5 = arith.constant 0 : index
    %5 = vector.load %arg2[%c0_4, %c0_5] : memref<8x2xf32, #tpu.memory_space<vmem>>, vector<8x2xf32>
    %cst = arith.constant dense<0.000000e+00> : vector<1x8xf32>
    %6 = tpu.matmul %4, %5, %cst {dimension_numbers = #tpu.dot_dimension_numbers<[1], [1], [0], [0], [0, 0, 1, 0], [], []>} : vector<1x2xf32>, vector<8x2xf32>, vector<1x8xf32> -> vector<1x8xf32>
    %7 = arith.addf %3, %6 : vector<1x8xf32>
    %c0_6 = arith.constant 0 : index
    %c0_7 = arith.constant 0 : index
    %8 = vector.load %arg6[%c0_6, %c0_7] : memref<1x8xf32, #tpu.memory_space<vmem>>, vector<1x8xf32>
    tpu.vector_store %arg6[%c0_6, %c0_7], %7 {strides = array<i32>} : memref<1x8xf32, #tpu.memory_space<vmem>>, vector<1x8xf32>,
    %c0_i32_8 = arith.constant 0 : i32
    %9 = arith.cmpi eq, %arg1, %c0_i32_8 : i32
    %10 = arith.extui %9 : i1 to i32
    %c0_i32_9 = arith.constant 0 : i32
    %11 = arith.cmpi ne, %10, %c0_i32_9 : i32
    scf.if %11 {
      %c0_10 = arith.constant 0 : index
      %c0_11 = arith.constant 0 : index
      %12 = vector.load %arg6[%c0_10, %c0_11] : memref<1x8xf32, #tpu.memory_space<vmem>>, vector<1x8xf32>
      %c0_12 = arith.constant 0 : index
      %13 = memref.load %arg4[%c0_12] : memref<1xf32, #tpu.memory_space<smem>>
      %14 = vector.broadcast %13 : f32 to vector<1x8xf32>
      %15 = arith.addf %12, %14 : vector<1x8xf32>
      %c0_13 = arith.constant 0 : index
      %c0_14 = arith.constant 0 : index
      %16 = vector.load %arg5[%c0_13, %c0_14] : memref<1x8xf32, #tpu.memory_space<vmem>>, vector<1x8xf32>
      tpu.vector_store %arg5[%c0_13, %c0_14], %15 {strides = array<i32>} : memref<1x8xf32, #tpu.memory_space<vmem>>, vector<1x8xf32>,
    } else {
    }
    return
  }
  func.func @transform_0(%arg0: i32, %arg1: i32) -> (i32, i32) {
    %c0_i32 = arith.constant 0 : i32
    return %arg0, %arg1 : i32, i32
  }
  func.func @transform_1(%arg0: i32, %arg1: i32) -> (i32, i32) {
    %c0_i32 = arith.constant 0 : i32
    %c0_i32_0 = arith.constant 0 : i32
    return %c0_i32, %arg1 : i32, i32
  }
  func.func @transform_2(%arg0: i32, %arg1: i32) -> i32 {
    %c0_i32 = arith.constant 0 : i32
    %c0_i32_0 = arith.constant 0 : i32
    return %c0_i32 : i32
  }
  func.func @transform_3(%arg0: i32, %arg1: i32) -> (i32, i32) {
    %c0_i32 = arith.constant 0 : i32
    %c0_i32_0 = arith.constant 0 : i32
    return %c0_i32, %arg0 : i32, i32
  }
}

</mosaic_0001>

<llo_original>
// kernel: tpu_custom_call.1
$region0: #{tpu_custom_call.1}
  #allocation0 [shape = 'u32[]', space=smem, size = 0x4, offset = 0x4, fixed_abs, tag = 'smem constant byte address 0x4 - core index']
  #allocation1 [shape = 'u32[144,128]{1,0:T(1,128)}', space=vmem, size = 0x12000, scoped, tag = 'internal scratch']
  #allocation2 [shape = 'f32[1,8]{1,0:T(1,128)}', space=vmem, size = 0x200, scoped, tag = 'scratch operand']
  #allocation3 [shape = 'f32[1]{0:T(128)S(6)}', space=smem, size = 0x200, scoped, tag = 'scoped memory for tpu_custom_call.1']
  %s0 = inlined_call_operand.vmem [shape: f32[8,2], index: 0, kind: input, shape index: {}]
  %s1 = inlined_call_operand.vmem [shape: f32[1,2], index: 1, kind: input, shape index: {}]
  %s2 = inlined_call_operand.<no memory space> [shape: f32[1], index: 2, kind: input, shape index: {}]
  %s3 = inlined_call_operand.hbm [shape: f32[1,8], index: 3, kind: output, shape index: {}]
  %s4 = sld [smem:[#allocation0]]
  $region30: #{tpu_custom_call.1} parent=0
    _
  %s6 = ssub.s32 1, %s4
  %s7 = scalar_select 0, %s6, %s4
  %8 = sst [smem:[#allocation3]] %s2
  $region1: #{tpu_custom_call.1} parent=0
    #allocation4 [shape = 'u8[512]{0}', space=vmem, size = 0x400, scoped, tag = 'output window, operand 0, single buffered']
    #allocation5 [shape = 's32[1]{0}', space=sflag, size = 0x4, scoped, tag = 'scoped memory for tpu_custom_call.1']
    %9 = vsyncpa [#allocation5], 0
    // Predicated region
    $region2: #{tpu_custom_call.1} parent=1 // pred_check
      _
    $region3: #{tpu_custom_call.1} parent=1 // pred_check_branch
      %11 = sbr.rel (0) target = $region5
    $region4: #{tpu_custom_call.1} parent=1 // pred_region
      _
    $region5: #{tpu_custom_call.1} parent=1 // pred_fallthru
      _
    // Predicated region
    $region6: #{tpu_custom_call.1} parent=1 // pred_check
      _
    $region7: #{tpu_custom_call.1} parent=1 // pred_check_branch
      %13 = sbr.rel (0) target = $region9
    $region8: #{tpu_custom_call.1} parent=1 // pred_region
      _
    $region9: #{tpu_custom_call.1} parent=1 // pred_fallthru
      _
    // Predicated region
    $region10: #{tpu_custom_call.1} parent=1 // pred_check
      _
    $region11: #{tpu_custom_call.1} parent=1 // pred_check_branch
      %15 = sbr.rel (0) target = $region13
    $region12: #{tpu_custom_call.1} parent=1 // pred_region
      _
    $region13: #{tpu_custom_call.1} parent=1 // pred_fallthru
      _
    %p16 = scmp.eq.s32.totalorder 0, 0
    // Predicated region
    $region14: #{tpu_custom_call.1} parent=1 // pred_check
      %p17 = pneg %p16
    $region15: #{tpu_custom_call.1} parent=1 // pred_check_branch
      %19 = sbr.rel (%p17) target = $region17
    $region16: #{tpu_custom_call.1} parent=1 // pred_region
      %vm20 = vcmask 57344
      %21 = vst.msk [vmem:[#allocation2] sm:$0x1] %vm20, 0.0
    $region17: #{tpu_custom_call.1} parent=1 // pred_fallthru
      _
    %v22 = vld [vmem:[#allocation2] sm:$0x1]
    %v23 = vld [vmem:[%s1] sm:$0x1]
    %v24 = vld [vmem:[%s0] sm:$0xff]
    %vm25 = vcmask 15360
    %v27 = vsel %vm25, %v23, 0
    %v30 = vsel %vm25, %v24, 0
    %32 = vmatprep.subr.mxu0 0.0
    %33 = vmatpush1.xpose.msra.mxu0 %v30
    %34 = vmatprep.subr.mxu0 0.0
    %35 = vmatpush1.xpose.msra.mxu0 0.0
    %36 = vmatprep.subr.mxu0 0.0
    %37 = vmatpush1.xpose.msra.mxu0 0.0
    %38 = vmatprep.subr.mxu0 0.0
    %39 = vmatpush1.xpose.msra.mxu0 0.0
    %40 = vmatprep.subr.mxu0 0.0
    %41 = vmatpush1.xpose.msra.mxu0 0.0
    %42 = vmatprep.subr.mxu0 0.0
    %43 = vmatpush1.xpose.msra.mxu0 0.0
    %44 = vmatprep.subr.mxu0 0.0
    %45 = vmatpush1.xpose.msra.mxu0 0.0
    %46 = vmatprep.subr.mxu0 0.0
    %47 = vmatpush1.xpose.msra.mxu0 0.0
    %48 = vmatprep.subr.mxu0 0.0
    %49 = vmatpush1.xpose.msra.mxu0 0.0
    %50 = vmatprep.subr.mxu0 0.0
    %51 = vmatpush1.xpose.msra.mxu0 0.0
    %52 = vmatprep.subr.mxu0 0.0
    %53 = vmatpush1.xpose.msra.mxu0 0.0
    %54 = vmatprep.subr.mxu0 0.0
    %55 = vmatpush1.xpose.msra.mxu0 0.0
    %56 = vmatprep.subr.mxu0 0.0
    %57 = vmatpush1.xpose.msra.mxu0 0.0
    %58 = vmatprep.subr.mxu0 0.0
    %59 = vmatpush1.xpose.msra.mxu0 0.0
    %60 = vmatprep.subr.mxu0 0.0
    %61 = vmatpush1.xpose.msra.mxu0 0.0
    %62 = vmatprep.subr.mxu0 0.0
    %63 = vmatpush1.xpose.msra.mxu0 0.0
    %64 = vmatprep.subr.mxu0 0.0
    %65 = vmatpush1.xpose.msra.mxu0 0.0
    %66 = vmatprep.subr.mxu0 0.0
    %67 = vmatpush1.xpose.msra.mxu0 0.0
    %68 = vmatprep.subr.mxu0 0.0
    %69 = vmatpush1.xpose.msra.mxu0 0.0
    %70 = vmatprep.subr.mxu0 0.0
    %71 = vmatpush1.xpose.msra.mxu0 0.0
    %72 = vmatprep.subr.mxu0 0.0
    %73 = vmatpush1.xpose.msra.mxu0 0.0
    %74 = vmatprep.subr.mxu0 0.0
    %75 = vmatpush1.xpose.msra.mxu0 0.0
    %76 = vmatprep.subr.mxu0 0.0
    %77 = vmatpush1.xpose.msra.mxu0 0.0
    %78 = vmatprep.subr.mxu0 0.0
    %79 = vmatpush1.xpose.msra.mxu0 0.0
    %80 = vmatprep.subr.mxu0 0.0
    %81 = vmatpush1.xpose.msra.mxu0 0.0
    %82 = vmatprep.subr.mxu0 0.0
    %83 = vmatpush1.xpose.msra.mxu0 0.0
    %84 = vmatprep.subr.mxu0 0.0
    %85 = vmatpush1.xpose.msra.mxu0 0.0
    %86 = vmatprep.subr.mxu0 0.0
    %87 = vmatpush1.xpose.msra.mxu0 0.0
    %88 = vmatprep.subr.mxu0 0.0
    %89 = vmatpush1.xpose.msra.mxu0 0.0
    %90 = vmatprep.subr.mxu0 0.0
    %91 = vmatpush1.xpose.msra.mxu0 0.0
    %92 = vmatprep.subr.mxu0 0.0
    %93 = vmatpush1.xpose.msra.mxu0 0.0
    %94 = vmatprep.subr.mxu0 0.0
    %95 = vmatpush1.xpose.msra.mxu0 0.0
    %96 = vmatprep.mubr.f32.mxu0 0.0
    %97 = vmatmul.mubr.f32.gmra.mrb[0].mxu0 %v27
    %v98 = vpop.f32.mrb[0].mxu0
    %v99 = vadd.f32 0.0, %v98
    %v100 = vpop.f32.mrb[0].mxu0
    %101 = vdwg.mxu0
    %v102 = vadd.f32 %v22, %v99
    %vm103 = vcmask 57344
    %104 = vst.msk [vmem:[#allocation2] sm:$0x1] %vm103, %v102
    // Predicated region
    $region18: #{tpu_custom_call.1} parent=1 // pred_check
      %p105 = pneg %p16
    $region19: #{tpu_custom_call.1} parent=1 // pred_check_branch
      %107 = sbr.rel (%p105) target = $region21
    $region20: #{tpu_custom_call.1} parent=1 // pred_region
      %v108 = vld [vmem:[#allocation2] sm:$0x1]
      %s109 = sld [smem:[#allocation3]]
      %v110 = vstv %s109
      %v111 = vadd.f32 %v108, %v110
      %112 = vst.msk [vmem:[#allocation4] sm:$0x1] %vm103, %v111
    $region21: #{tpu_custom_call.1} parent=1 // pred_fallthru
      _
    // Predicated region
    $region22: #{tpu_custom_call.1} parent=1 // pred_check
      _
    $region23: #{tpu_custom_call.1} parent=1 // pred_check_branch
      %114 = sbr.rel (0) target = $region25
    $region24: #{tpu_custom_call.1} parent=1 // pred_region
      %s116 = ssub.s32 16, 16
      %117 = vsyncadd [#allocation5], %s116
      %s119 = sshll.u32 [#allocation4], 4
      %s120 = int_to_ptr.vmem [resolvable:$true] %s119
      %122 = dma.vmem_to_hbm [thread:$0]  %s120, 16, %s3, [#allocation5]
    $region25: #{tpu_custom_call.1} parent=1 // pred_fallthru
      _
    // Predicated region
    $region26: #{tpu_custom_call.1} parent=1 // pred_check
      _
    $region27: #{tpu_custom_call.1} parent=1 // pred_check_branch
      %124 = sbr.rel (0) target = $region29
    $region28: #{tpu_custom_call.1} parent=1 // pred_region
      %125 = dma.done [#allocation5], 16
    $region29: #{tpu_custom_call.1} parent=1 // pred_fallthru
      _
    %126 = vsyncpa [#allocation5], 1

</llo_original>
